<compile_context>
chip_gen: v7x
topology: tpu7x:2x2x1
jax: 0.10.0
libtpu: 0.0.40
codegen_flags: <defaults>
</compile_context>

<pallas_src>
import functools

import jax
import jax.numpy as jnp
from jax import lax
from jax.experimental import pallas as pl
from jax.experimental.pallas import tpu as pltpu

_MIB = 1024 * 1024


# --------------------------------------------------------------------------- #
# Small helpers
# --------------------------------------------------------------------------- #
def _round_up(v, m):
    return -(-v // m) * m


def _round_down(v, m):
    return max(m, (v // m) * m)


def _block_target_bytes():
    """Generation-aware per-block byte target (input block, single buffer)."""
    cap = 128 * _MIB
    try:
        info = pltpu.get_tpu_info()
        cap = int(getattr(info, "vmem_capacity_bytes", cap) or cap)
    except Exception:
        pass
    # v7x-class (64 MiB VMEM, fastest HBM): bigger blocks amortize the fixed
    # ~0.35 us/step cost; v5e/v6e (128 MiB VMEM): 8 MiB already ~roofline.
    return (16 * _MIB) if cap <= 64 * _MIB else (8 * _MIB)


def _vmem_limit(in_block_bytes):
    """Scoped-VMEM budget: 2x double-buffered inputs + output/scratch/slack."""
    need = 2 * in_block_bytes + 8 * _MIB
    return int(min(max(need, 32 * _MIB), 52 * _MIB))  # < 64 MiB physical on v7x


# --------------------------------------------------------------------------- #
# Rows path: (R, HW) with optional HW (reduction) tiling
# --------------------------------------------------------------------------- #
def _rows_kernel(x_ref, o_ref, acc_ref, *, inv_hw, hw, thw, nk, mask_tail):
    k = pl.program_id(1)

    @pl.when(k == 0)
    def _init():
        acc_ref[...] = jnp.zeros_like(acc_ref)

    x = x_ref[...]
    if mask_tail:
        # Last HW chunk is partial: zero out-of-range columns so padded reads
        # never contribute to the accumulator.
        col = k * thw + lax.broadcasted_iota(jnp.int32, x.shape, 1)
        x = jnp.where(col < hw, x, jnp.zeros_like(x))

    # f32 accumulation fused into the reduction (no full-block f32 temp).
    acc_ref[...] += jnp.sum(x, axis=-1, keepdims=True, dtype=jnp.float32)

    @pl.when(k == nk - 1)
    def _finalize():
        o_ref[...] = (acc_ref[...] * inv_hw).astype(o_ref.dtype)


def _choose_rows_block(r, hw, isz, sub, target):
    """Pick (br, thw, nk): rows/block, spatial chunk, number of spatial chunks."""
    hw_pad = _round_up(hw, 128)
    min_rows = r if r <= sub else sub
    min_rows_pad = _round_up(min_rows, sub)

    if min_rows_pad * hw_pad * isz > target:
        # Even a minimal row block with full HW exceeds the budget (very large
        # feature maps): tile the reduction axis instead of blowing VMEM.
        thw = _round_down(target // (min_rows_pad * isz), 128)
        thw = min(thw, hw_pad)
        return min_rows, thw, pl.cdiv(hw, thw)

    if r <= sub:
        return r, hw, 1

    br = _round_down(target // (hw_pad * isz), sub)                   # byte target
    br_steps = _round_down(max(sub, r // 8), sub)                      # ~8 grid steps
    br_floor = _round_down(max(sub, (2 * _MIB) // (hw_pad * isz)), sub)  # >= ~2 MiB
    br = min(br, max(br_steps, br_floor))
    br = min(br, _round_up(r, sub))
    return max(sub, br), hw, 1


def _gap_rows(x2d, r, hw, inv_hw, dtype, isz, sub, target):
    br, thw, nk = _choose_rows_block(r, hw, isz, sub, target)
    mask_tail = (nk > 1) and (hw % thw != 0)
    kernel = functools.partial(
        _rows_kernel, inv_hw=inv_hw, hw=hw, thw=thw, nk=nk, mask_tail=mask_tail)

    x_block_bytes = _round_up(br, sub) * _round_up(thw, 128) * isz

    return pl.pallas_call(
        kernel,
        out_shape=jax.ShapeDtypeStruct((r, 1), dtype),
        grid_spec=pltpu.PrefetchScalarGridSpec(
            num_scalar_prefetch=0,
            grid=(pl.cdiv(r, br), nk),
            in_specs=[pl.BlockSpec((br, thw), lambda i, k: (i, k))],
            out_specs=pl.BlockSpec((br, 1), lambda i, k: (i, 0)),
            scratch_shapes=[pltpu.VMEM((br, 1), jnp.float32)],
        ),
        compiler_params=pltpu.CompilerParams(
            dimension_semantics=("parallel", "arbitrary"),
            vmem_limit_bytes=_vmem_limit(x_block_bytes),
        ),
    )(x2d)


# --------------------------------------------------------------------------- #
# MXU segment-sum path: (N, C*HW) lane-dense blocks, block-diagonal ones matmul
# --------------------------------------------------------------------------- #
def _mxu_kernel(x_ref, d_ref, o_ref, *, inv_hw):
    # x_ref: (BN, TC*HW), d_ref: (TC*HW, TC) block-diagonal ones.
    s = jnp.dot(x_ref[...], d_ref[...], preferred_element_type=jnp.float32)
    o_ref[...] = (s * inv_hw).astype(o_ref.dtype)


def _choose_mxu_batch(n, c, hw, tc, isz, sub, target):
    if n <= sub:
        return n
    lane = tc * hw
    bn = _round_down(target // (lane * isz), sub)
    steps_c = c // tc
    if steps_c < 4:
        rows_wanted = -(-4 // steps_c)  # ceil(4 / steps_c): keep >= ~4 grid steps
        bn = min(bn, _round_down(max(sub, n // rows_wanted), sub))
    return max(sub, min(bn, _round_up(n, sub)))


def _gap_mxu(x2d, n, c, hw, inv_hw, dtype, isz, sub, target):
    tc = 128
    lane = tc * hw
    bn = _choose_mxu_batch(n, c, hw, tc, isz, sub, target)

    # Block-diagonal ones: D[g*hw + s, g2] = (g == g2).  Exact in f32 accumulation.
    d = (jnp.arange(lane, dtype=jnp.int32)[:, None] // hw
         == jnp.arange(tc, dtype=jnp.int32)[None, :]).astype(dtype)

    kernel = functools.partial(_mxu_kernel, inv_hw=inv_hw)
    x_block_bytes = _round_up(bn, sub) * lane * isz
    d_block_bytes = _round_up(lane, sub) * tc * isz

    return pl.pallas_call(
        kernel,
        out_shape=jax.ShapeDtypeStruct((n, c), dtype),
        grid_spec=pltpu.PrefetchScalarGridSpec(
            num_scalar_prefetch=0,
            grid=(pl.cdiv(n, bn), c // tc),
            in_specs=[
                pl.BlockSpec((bn, lane), lambda i, j: (i, j)),
                pl.BlockSpec((lane, tc), lambda i, j: (0, 0)),  # constant; not re-DMAed
            ],
            out_specs=pl.BlockSpec((bn, tc), lambda i, j: (i, j)),
        ),
        compiler_params=pltpu.CompilerParams(
            dimension_semantics=("parallel", "parallel"),
            vmem_limit_bytes=_vmem_limit(x_block_bytes + d_block_bytes),
        ),
    )(x2d, d)


# --------------------------------------------------------------------------- #
# Public wrapper (matches the torch module's forward semantics)
# --------------------------------------------------------------------------- #
def global_avg_pool2d(x: jax.Array, *, block_target_bytes=None) -> jax.Array:
    """x: (N, C, H, W) -> (N, C), mean over spatial dims."""
    n, c, h, w = x.shape
    hw = h * w
    dtype = x.dtype
    isz = int(jnp.dtype(dtype).itemsize)
    sub = max(8, 32 // max(isz, 1))  # sublane padding multiple: 8/16/32 for 4/2/1-byte
    target = int(block_target_bytes) if block_target_bytes else _block_target_bytes()
    inv_hw = 1.0 / float(hw)

    tc = 128
    d_bytes = tc * hw * tc * isz
    if hw < 128 and c % tc == 0 and d_bytes <= 4 * _MIB:
        # Small-HW classifier-head case: lane-dense slab + MXU segment-sum.
        x2d = x.reshape(n, c * hw)                 # metadata-only reshape
        return _gap_mxu(x2d, n, c, hw, inv_hw, dtype, isz, sub, target)

    # Generic rows path.
    r = n * c
    x2d = x.reshape(r, hw)                         # metadata-only reshape
    out = _gap_rows(x2d, r, hw, inv_hw, dtype, isz, sub, target)
    return out.reshape(n, c)


if __name__ == "__main__":
    key = jax.random.PRNGKey(0)

    # Small deterministic example consistent with the module.
    x = jax.random.normal(key, (2, 4, 16, 16), dtype=jnp.float32)
    out = global_avg_pool2d(x)
    jax.block_until_ready(out)
    ref = jnp.mean(x.reshape(2, 4, -1), axis=2)
    assert out.shape == (2, 4)
    assert jnp.allclose(out, ref, atol=1e-5, rtol=1e-5)

    # Classifier-head shape: exercises the lane-dense MXU segment-sum path.
    x2 = jax.random.normal(jax.random.PRNGKey(1), (2, 512, 7, 7), dtype=jnp.float32)
    out2 = global_avg_pool2d(x2)
    ref2 = jnp.mean(x2.reshape(2, 512, -1), axis=2)
    assert jnp.allclose(out2, ref2, atol=1e-5, rtol=1e-5)

    # bf16 input (f32 accumulation fused inside the kernel).
    x3 = jax.random.normal(jax.random.PRNGKey(2), (2, 8, 20, 20), dtype=jnp.bfloat16)
    out3 = global_avg_pool2d(x3)
    ref3 = jnp.mean(x3.reshape(2, 8, -1).astype(jnp.float32), axis=2)
    assert jnp.allclose(out3.astype(jnp.float32), ref3, atol=2e-2, rtol=2e-2)

    # Tiny forced block target: exercises the spatial-tiling + tail-mask path.
    x4 = jax.random.normal(jax.random.PRNGKey(3), (2, 4, 40, 40), dtype=jnp.float32)
    out4 = global_avg_pool2d(x4, block_target_bytes=32 * 1024)
    ref4 = jnp.mean(x4.reshape(2, 4, -1), axis=2)
    assert jnp.allclose(out4, ref4, atol=1e-5, rtol=1e-5)

    jax.block_until_ready((out, out2, out3, out4))
    print("KERNEL_OK")
</pallas_src>

<mosaic_0001>
module attributes {stable_mosaic.version = 11 : i64} {
  func.func @_rows_kernel(%arg0: i32, %arg1: i32, %arg2: memref<8x256xf32, #tpu.memory_space<vmem>>, %arg3: memref<8x1xf32, #tpu.memory_space<vmem>>, %arg4: memref<8x1xf32, #tpu.memory_space<vmem>>) attributes {dimension_semantics = [#tpu.dimension_semantics<parallel>, #tpu.dimension_semantics<arbitrary>], iteration_bounds = array<i64: 1, 1>, scalar_prefetch = 0 : i64, scratch_operands = 1 : i64, tpu.core_type = #tpu.core_type<tc>, window_params = [{transform_indices = @transform_0, window_bounds = array<i64: 8, 256>}, {transform_indices = @transform_1, window_bounds = array<i64: 8, 1>}]} {
    %c0_i32 = arith.constant 0 : i32
    %0 = arith.cmpi eq, %arg1, %c0_i32 : i32
    %1 = arith.extui %0 : i1 to i32
    %c0_i32_0 = arith.constant 0 : i32
    %2 = arith.cmpi ne, %1, %c0_i32_0 : i32
    scf.if %2 {
      %cst_8 = arith.constant 0.000000e+00 : f32
      %12 = vector.broadcast %cst_8 : f32 to vector<8x1xf32>
      %c0_9 = arith.constant 0 : index
      %c0_10 = arith.constant 0 : index
      %13 = vector.load %arg4[%c0_9, %c0_10] : memref<8x1xf32, #tpu.memory_space<vmem>>, vector<8x1xf32>
      tpu.vector_store %arg4[%c0_9, %c0_10], %12 {strides = array<i32>} : memref<8x1xf32, #tpu.memory_space<vmem>>, vector<8x1xf32>,
    } else {
    }
    %c0 = arith.constant 0 : index
    %c0_1 = arith.constant 0 : index
    %3 = vector.load %arg2[%c0, %c0_1] : memref<8x256xf32, #tpu.memory_space<vmem>>, vector<8x256xf32>
    %c0_2 = arith.constant 0 : index
    %c0_3 = arith.constant 0 : index
    %4 = vector.load %arg4[%c0_2, %c0_3] : memref<8x1xf32, #tpu.memory_space<vmem>>, vector<8x1xf32>
    %cst = arith.constant dense<0.000000e+00> : vector<8xf32>
    %5 = vector.multi_reduction <add>, %3, %cst [1] : vector<8x256xf32> to vector<8xf32>
    %6 = vector.shape_cast %5 : vector<8xf32> to vector<8x1xf32>
    %7 = arith.addf %4, %6 : vector<8x1xf32>
    %c0_4 = arith.constant 0 : index
    %c0_5 = arith.constant 0 : index
    %8 = vector.load %arg4[%c0_4, %c0_5] : memref<8x1xf32, #tpu.memory_space<vmem>>, vector<8x1xf32>
    tpu.vector_store %arg4[%c0_4, %c0_5], %7 {strides = array<i32>} : memref<8x1xf32, #tpu.memory_space<vmem>>, vector<8x1xf32>,
    %c0_i32_6 = arith.constant 0 : i32
    %9 = arith.cmpi eq, %arg1, %c0_i32_6 : i32
    %10 = arith.extui %9 : i1 to i32
    %c0_i32_7 = arith.constant 0 : i32
    %11 = arith.cmpi ne, %10, %c0_i32_7 : i32
    scf.if %11 {
      %c0_8 = arith.constant 0 : index
      %c0_9 = arith.constant 0 : index
      %12 = vector.load %arg4[%c0_8, %c0_9] : memref<8x1xf32, #tpu.memory_space<vmem>>, vector<8x1xf32>
      %cst_10 = arith.constant 3.906250e-03 : f32
      %13 = vector.broadcast %cst_10 : f32 to vector<8x1xf32>
      %14 = arith.mulf %12, %13 : vector<8x1xf32>
      %c0_11 = arith.constant 0 : index
      %c0_12 = arith.constant 0 : index
      %15 = vector.load %arg3[%c0_11, %c0_12] : memref<8x1xf32, #tpu.memory_space<vmem>>, vector<8x1xf32>
      tpu.vector_store %arg3[%c0_11, %c0_12], %14 {strides = array<i32>} : memref<8x1xf32, #tpu.memory_space<vmem>>, vector<8x1xf32>,
    } else {
    }
    return
  }
  func.func @transform_0(%arg0: i32, %arg1: i32) -> (i32, i32) {
    %c0_i32 = arith.constant 0 : i32
    return %arg0, %arg1 : i32, i32
  }
  func.func @transform_1(%arg0: i32, %arg1: i32) -> (i32, i32) {
    %c0_i32 = arith.constant 0 : i32
    %c0_i32_0 = arith.constant 0 : i32
    return %arg0, %c0_i32 : i32, i32
  }
}

</mosaic_0001>

<llo_original>
// kernel: tpu_custom_call.1
$region0: #{tpu_custom_call.1}
  #allocation0 [shape = 'u32[]', space=smem, size = 0x4, offset = 0x4, fixed_abs, tag = 'smem constant byte address 0x4 - core index']
  #allocation1 [shape = 'u32[144,128]{1,0:T(1,128)}', space=vmem, size = 0x12000, scoped, tag = 'internal scratch']
  #allocation2 [shape = 'f32[8,1]{1,0:T(8,128)}', space=vmem, size = 0x1000, scoped, tag = 'scratch operand']
  %s0 = inlined_call_operand.hbm [shape: f32[8,256], index: 0, kind: input, shape index: {}]
  %s1 = inlined_call_operand.vmem [shape: f32[8,1], index: 1, kind: output, shape index: {}]
  %s2 = sld [smem:[#allocation0]]
  $region26: #{tpu_custom_call.1} parent=0
    _
  %s4 = ssub.s32 1, %s2
  %s5 = scalar_select 0, %s4, %s2
  $region1: #{tpu_custom_call.1} parent=0
    #allocation3 [shape = 'u8[8192]{0}', space=vmem, size = 0x2000, scoped, tag = 'input window, operand 0, single buffered']
    #allocation4 [shape = 's32[1]{0}', space=sflag, size = 0x4, scoped, tag = 'scoped memory for tpu_custom_call.1']
    %6 = vsyncpa [#allocation4], 0
    // Predicated region
    $region2: #{tpu_custom_call.1} parent=1 // pred_check
      _
    $region3: #{tpu_custom_call.1} parent=1 // pred_check_branch
      %8 = sbr.rel (0) target = $region5
    $region4: #{tpu_custom_call.1} parent=1 // pred_region
      %s10 = ssub.s32 256, 256
      %11 = vsyncadd [#allocation4], %s10
      %s13 = sshll.u32 [#allocation3], 4
      %s14 = int_to_ptr.vmem [resolvable:$true] %s13
      %16 = dma.hbm_to_vmem [thread:$0]  %s0, 256, %s14, [#allocation4]
    $region5: #{tpu_custom_call.1} parent=1 // pred_fallthru
      _
    // Predicated region
    $region6: #{tpu_custom_call.1} parent=1 // pred_check
      _
    $region7: #{tpu_custom_call.1} parent=1 // pred_check_branch
      %18 = sbr.rel (0) target = $region9
    $region8: #{tpu_custom_call.1} parent=1 // pred_region
      %19 = dma.done [#allocation4], 256
    $region9: #{tpu_custom_call.1} parent=1 // pred_fallthru
      _
    %p20 = scmp.eq.s32.totalorder 0, 0
    // Predicated region
    $region10: #{tpu_custom_call.1} parent=1 // pred_check
      %p21 = pneg %p20
    $region11: #{tpu_custom_call.1} parent=1 // pred_check_branch
      %23 = sbr.rel (%p21) target = $region13
    $region12: #{tpu_custom_call.1} parent=1 // pred_region
      %vm24 = vcmask 7168
      %25 = vst.msk [vmem:[#allocation2] sm:$0xff] %vm24, 0.0
    $region13: #{tpu_custom_call.1} parent=1 // pred_fallthru
      _
    %v26 = vld [vmem:[#allocation3] sm:$0xff]
    %v27 = vld [vmem:[#allocation3 + $0x8] sm:$0xff]
    %v28 = vld [vmem:[#allocation2] sm:$0xff]
    %v29 = vadd.f32 %v26, %v27
    %30 = vadd.xlane.f32.xlu0 %v29
    %v31 = vpop.xlane.xlu0 %30
    %v32 = vadd.f32 %v28, %v31
    %vm33 = vcmask 7168
    %34 = vst.msk [vmem:[#allocation2] sm:$0xff] %vm33, %v32
    // Predicated region
    $region14: #{tpu_custom_call.1} parent=1 // pred_check
      %p35 = pneg %p20
    $region15: #{tpu_custom_call.1} parent=1 // pred_check_branch
      %37 = sbr.rel (%p35) target = $region17
    $region16: #{tpu_custom_call.1} parent=1 // pred_region
      %v38 = vld [vmem:[#allocation2] sm:$0xff]
      %v39 = vmul.f32 %v38, 0.00390625
      %40 = vst.msk [vmem:[%s1] sm:$0xff] %vm33, %v39
    $region17: #{tpu_custom_call.1} parent=1 // pred_fallthru
      _
    // Predicated region
    $region18: #{tpu_custom_call.1} parent=1 // pred_check
      _
    $region19: #{tpu_custom_call.1} parent=1 // pred_check_branch
      %42 = sbr.rel (0) target = $region21
    $region20: #{tpu_custom_call.1} parent=1 // pred_region
      _
    $region21: #{tpu_custom_call.1} parent=1 // pred_fallthru
      _
    // Predicated region
    $region22: #{tpu_custom_call.1} parent=1 // pred_check
      _
    $region23: #{tpu_custom_call.1} parent=1 // pred_check_branch
      %44 = sbr.rel (0) target = $region25
    $region24: #{tpu_custom_call.1} parent=1 // pred_region
      _
    $region25: #{tpu_custom_call.1} parent=1 // pred_fallthru
      _
    %45 = vsyncpa [#allocation4], 1

</llo_original>
